<compile_context>
chip_gen: v7x
topology: tpu7x:2x2x1
jax: 0.10.0
libtpu: 0.0.40
codegen_flags: <defaults>
</compile_context>

<pallas_src>
import math

import jax
import jax.numpy as jnp
from jax import lax
from jax.experimental import pallas as pl
from jax.experimental.pallas import tpu as pltpu

EPS = 1e-5
F32 = jnp.float32


def _round_up(x, m):
    return (x + m - 1) // m * m


def _pad_to(x, shape):
    return jnp.pad(x, [(0, t - s) for s, t in zip(x.shape, shape)])


# ----------------------------- kernels -----------------------------

def _gconv_proj_kernel(x_ref, a_ref, w_ref, bfc_ref, xout_ref, scout_ref):
    """Per-graph: proj = X @ [W_fc | W_sc]; h = relu(proj_fc + b_fc); x = A @ h; sc = proj_sc."""
    dop = xout_ref.shape[-1]
    # Single fused matmul over X (reads X once, wider N on the MXU).
    proj = jnp.dot(x_ref[...], w_ref[...], preferred_element_type=F32)      # (N, 2*Dop) f32
    h = jnp.maximum(proj[:, :dop] + bfc_ref[...], 0.0)                      # relu (f32)
    x = jnp.dot(a_ref[...], h.astype(a_ref.dtype), preferred_element_type=F32)
    xout_ref[...] = x                                                        # f32 -> feeds bn1 stats
    scout_ref[...] = proj[:, dop:].astype(scout_ref.dtype)


def _gate_kernel(x_ref, sc_ref, s1_ref, t1_ref, wg1_ref, bg1_ref, wg2_ref, bg2_ref, out_ref):
    """Per-graph: bn1 normalize + relu, then gated shortcut ('gsc'). Output is pre-bn2 (f32)."""
    xr = jnp.maximum(x_ref[...] * s1_ref[...] + t1_ref[...], 0.0)            # f32 VPU math
    x1 = jnp.dot(sc_ref[...], wg1_ref[...], preferred_element_type=F32) + bg1_ref[...]
    x2 = jnp.dot(xr.astype(wg2_ref.dtype), wg2_ref[...], preferred_element_type=F32) + bg2_ref[...]
    gate = jax.nn.sigmoid(x1 + x2)                                           # EUP, f32
    out_ref[...] = (x1 * gate + x2 * (1.0 - gate)).astype(out_ref.dtype)


def _bn_act_kernel(x_ref, s_ref, t_ref, out_ref):
    """Per-graph: bn2 normalize + relu (dropout with p=0 is the identity)."""
    out_ref[...] = jnp.maximum(x_ref[...] * s_ref[...] + t_ref[...], 0.0).astype(out_ref.dtype)


# ----------------------------- wrapper -----------------------------

def _bn_scale_shift(v, gamma, beta):
    """Train-mode BatchNorm1d stats (biased variance, single pass) -> per-channel scale/shift."""
    flat = v.reshape(-1, v.shape[-1]).astype(F32)
    mean = jnp.mean(flat, axis=0)
    var = jnp.maximum(jnp.mean(flat * flat, axis=0) - mean * mean, 0.0)
    scale = gamma.reshape(-1) * lax.rsqrt(var + EPS)
    shift = beta.reshape(-1) - mean * scale
    return scale.reshape(1, -1), shift.reshape(1, -1)


def resblock_forward(X, A, params, compute_dtype=jnp.bfloat16):
    B, N, Din = X.shape
    Dout = params["w_fc"].shape[1]
    Np = _round_up(N, 8)
    Dip = _round_up(Din, 128)
    Dop = _round_up(Dout, 128)
    cd = compute_dtype

    # Zero-pad to lane-dense shapes; cast matmul operands to the compute dtype.
    Xp = _pad_to(X, (B, Np, Dip)).astype(cd)
    Ap = _pad_to(A, (B, Np, Np)).astype(cd)
    w_fcsc = jnp.concatenate([_pad_to(params["w_fc"], (Dip, Dop)),
                              _pad_to(params["w_sc"], (Dip, Dop))], axis=1).astype(cd)
    b_fc = _pad_to(params["b_fc"], (1, Dop)).astype(F32)
    w_g1 = _pad_to(params["w_g1"], (Dop, Dop)).astype(cd)
    b_g1 = _pad_to(params["b_g1"], (1, Dop)).astype(F32)
    w_g2 = _pad_to(params["w_g2"], (Dop, Dop)).astype(cd)
    b_g2 = _pad_to(params["b_g2"], (1, Dop)).astype(F32)
    g1 = _pad_to(params["bn1_gamma"], (1, Dop)).astype(F32)
    be1 = _pad_to(params["bn1_beta"], (1, Dop)).astype(F32)
    g2 = _pad_to(params["bn2_gamma"], (1, Dop)).astype(F32)
    be2 = _pad_to(params["bn2_beta"], (1, Dop)).astype(F32)

    cd_bytes = Xp.dtype.itemsize
    cparams = pltpu.CompilerParams(
        dimension_semantics=("parallel",),          # graphs split across TensorCores (v7x)
        vmem_limit_bytes=32 * 1024 * 1024,
    )

    def graph_block(d):
        return pl.BlockSpec((None, Np, d), lambda b: (b, 0, 0))

    def vec_block(d):
        return pl.BlockSpec((1, d), lambda b: (0, 0))

    def mat_block(r, c):
        return pl.BlockSpec((r, c), lambda b: (0, 0))

    # ---- pass 1: GConv + fused shortcut projection --------------------------------
    x_pre, sc = pl.pallas_call(
        _gconv_proj_kernel,
        grid=(B,),
        in_specs=[graph_block(Dip), graph_block(Np),
                  mat_block(Dip, 2 * Dop), vec_block(Dop)],
        out_specs=[graph_block(Dop), graph_block(Dop)],
        out_shape=[jax.ShapeDtypeStruct((B, Np, Dop), F32),
                   jax.ShapeDtypeStruct((B, Np, Dop), cd)],
        compiler_params=cparams,
        cost_estimate=pl.CostEstimate(
            flops=2 * B * Np * (Dip * 2 * Dop + Np * Dop),
            transcendentals=0,
            bytes_accessed=(Xp.size + Ap.size + w_fcsc.size) * cd_bytes
                           + B * Np * Dop * (4 + cd_bytes)),
    )(Xp, Ap, w_fcsc, b_fc)

    # bn1 statistics over valid (unpadded) rows only — tiny (1, C) reduction done in XLA
    # so the in-kernel batch axis can stay fully parallel.
    s1, t1 = _bn_scale_shift(x_pre[:, :N, :], g1, be1)

    # ---- pass 2: bn1 normalize + relu + gated shortcut -----------------------------
    xg = pl.pallas_call(
        _gate_kernel,
        grid=(B,),
        in_specs=[graph_block(Dop), graph_block(Dop),
                  vec_block(Dop), vec_block(Dop),
                  mat_block(Dop, Dop), vec_block(Dop),
                  mat_block(Dop, Dop), vec_block(Dop)],
        out_specs=graph_block(Dop),
        out_shape=jax.ShapeDtypeStruct((B, Np, Dop), F32),
        compiler_params=cparams,
        cost_estimate=pl.CostEstimate(
            flops=4 * B * Np * Dop * Dop + 12 * B * Np * Dop,
            transcendentals=B * Np * Dop,
            bytes_accessed=B * Np * Dop * (8 + cd_bytes) + 2 * Dop * Dop * cd_bytes),
    )(x_pre, sc, s1, t1, w_g1, b_g1, w_g2, b_g2)

    # bn2 statistics (valid rows only).
    s2, t2 = _bn_scale_shift(xg[:, :N, :], g2, be2)

    # ---- pass 3: bn2 normalize + relu (dropout p=0 -> identity) --------------------
    out_p = pl.pallas_call(
        _bn_act_kernel,
        grid=(B,),
        in_specs=[graph_block(Dop), vec_block(Dop), vec_block(Dop)],
        out_specs=graph_block(Dop),
        out_shape=jax.ShapeDtypeStruct((B, Np, Dop), X.dtype),
        compiler_params=cparams,
        cost_estimate=pl.CostEstimate(
            flops=3 * B * Np * Dop,
            transcendentals=0,
            bytes_accessed=2 * B * Np * Dop * 4),
    )(xg, s2, t2)

    return out_p[:, :N, :Dout], A


# ----------------------------- pure-JAX reference -----------------------------

def _batchnorm_ref(v, gamma, beta):
    """Train-mode BatchNorm1d over flattened (B*N, C) rows (biased variance)."""
    B, N, C = v.shape
    flat = v.reshape(B * N, C)
    mean = jnp.mean(flat, axis=0, keepdims=True)
    var = jnp.mean((flat - mean) ** 2, axis=0, keepdims=True)
    inv = lax.rsqrt(var + EPS)
    return (v - mean[None]) * inv[None] * gamma[None] + beta[None]


def resblock_reference(X, A, params, compute_dtype=jnp.float32):
    """Same math as the module; `compute_dtype` mirrors the kernel's matmul-operand dtype."""
    cd = compute_dtype
    Xc, Ac = X.astype(cd), A.astype(cd)
    h = jnp.maximum(jnp.einsum('bni,io->bno', Xc, params["w_fc"].astype(cd),
                               preferred_element_type=F32) + params["b_fc"][None], 0.0)
    x = jnp.einsum('bnm,bmo->bno', Ac, h.astype(cd), preferred_element_type=F32)
    x = jnp.maximum(_batchnorm_ref(x, params["bn1_gamma"], params["bn1_beta"]), 0.0)
    sc = jnp.einsum('bni,io->bno', Xc, params["w_sc"].astype(cd), preferred_element_type=F32)
    x1 = jnp.einsum('bno,op->bnp', sc.astype(cd), params["w_g1"].astype(cd),
                    preferred_element_type=F32) + params["b_g1"][None]
    x2 = jnp.einsum('bno,op->bnp', x.astype(cd), params["w_g2"].astype(cd),
                    preferred_element_type=F32) + params["b_g2"][None]
    gate = jax.nn.sigmoid(x1 + x2)
    xg = x1 * gate + x2 * (1.0 - gate)
    return jnp.maximum(_batchnorm_ref(xg, params["bn2_gamma"], params["bn2_beta"]), 0.0)


def make_params(key, in_dim, out_dim):
    ks = jax.random.split(key, 8)

    def xavier(k, fan_in, fan_out):
        std = math.sqrt(2.0 / (fan_in + fan_out))
        return std * jax.random.normal(k, (fan_in, fan_out), F32)

    return {
        "w_fc": xavier(ks[0], in_dim, out_dim),
        "b_fc": 0.1 * jax.random.normal(ks[1], (1, out_dim), F32),
        "w_sc": xavier(ks[2], in_dim, out_dim),
        "w_g1": xavier(ks[3], out_dim, out_dim),
        "b_g1": 0.1 * jax.random.normal(ks[4], (1, out_dim), F32),
        "w_g2": xavier(ks[5], out_dim, out_dim),
        "b_g2": 0.1 * jax.random.normal(ks[6], (1, out_dim), F32),
        "bn1_gamma": jnp.ones((1, out_dim), F32),
        "bn1_beta": jnp.zeros((1, out_dim), F32),
        "bn2_gamma": jnp.ones((1, out_dim), F32),
        "bn2_beta": jnp.zeros((1, out_dim), F32),
    }


if __name__ == "__main__":
    B, N, in_dim, out_dim = 2, 8, 16, 32
    key = jax.random.PRNGKey(0)
    kx, ka, kp = jax.random.split(key, 3)

    X = jax.random.normal(kx, (B, N, in_dim), F32)
    # symmetric 0/1 adjacency with self-loops
    Araw = (jax.random.uniform(ka, (B, N, N)) > 0.5).astype(F32)
    A = jnp.clip(Araw + jnp.transpose(Araw, (0, 2, 1)) + jnp.eye(N)[None], 0.0, 1.0)

    params = make_params(kp, in_dim, out_dim)

    # f32 operands: tight check against the PyTorch-semantics reference.
    out_f32, A_out = resblock_forward(X, A, params, compute_dtype=jnp.float32)
    out_f32 = jax.block_until_ready(out_f32)
    ref_f32 = resblock_reference(X, A, params, compute_dtype=jnp.float32)
    assert out_f32.shape == (B, N, out_dim)
    assert jnp.allclose(out_f32, ref_f32, rtol=2e-4, atol=2e-4), "f32 mismatch vs reference"

    # bf16 matmul operands + f32 accumulation (v6e/v7x fast path): check against a
    # reference that mirrors the bf16 operand casts.
    out_bf16, _ = resblock_forward(X, A, params, compute_dtype=jnp.bfloat16)
    out_bf16 = jax.block_until_ready(out_bf16)
    ref_bf16 = resblock_reference(X, A, params, compute_dtype=jnp.bfloat16)
    assert bool(jnp.all(jnp.isfinite(out_bf16)))
    assert jnp.allclose(out_bf16, ref_bf16, rtol=2e-2, atol=2e-2), "bf16 mismatch vs reference"

    print("KERNEL_OK")
</pallas_src>

<mosaic_0001>
module attributes {stable_mosaic.version = 11 : i64} {
  func.func @_gconv_proj_kernel(%arg0: i32, %arg1: memref<1x8x128xf32, #tpu.memory_space<vmem>>, %arg2: memref<1x8x8xf32, #tpu.memory_space<vmem>>, %arg3: memref<128x256xf32, #tpu.memory_space<vmem>>, %arg4: memref<1x128xf32, #tpu.memory_space<vmem>>, %arg5: memref<1x8x128xf32, #tpu.memory_space<vmem>>, %arg6: memref<1x8x128xf32, #tpu.memory_space<vmem>>) attributes {dimension_semantics = [#tpu.dimension_semantics<parallel>], iteration_bounds = array<i64: 2>, scalar_prefetch = 0 : i64, scratch_operands = 0 : i64, tpu.core_type = #tpu.core_type<tc>, window_params = [{transform_indices = @transform_0, window_bounds = array<i64: 1, 8, 128>}, {transform_indices = @transform_1, window_bounds = array<i64: 1, 8, 8>}, {pipeline_mode = #tpu.pipeline_mode<synchronous>, transform_indices = @transform_2, window_bounds = array<i64: 128, 256>}, {pipeline_mode = #tpu.pipeline_mode<synchronous>, transform_indices = @transform_3, window_bounds = array<i64: 1, 128>}, {transform_indices = @transform_4, window_bounds = array<i64: 1, 8, 128>}, {transform_indices = @transform_5, window_bounds = array<i64: 1, 8, 128>}]} {
    %c0 = arith.constant 0 : index
    %c0_0 = arith.constant 0 : index
    %c0_1 = arith.constant 0 : index
    %0 = vector.load %arg1[%c0, %c0_0, %c0_1] : memref<1x8x128xf32, #tpu.memory_space<vmem>>, vector<1x8x128xf32>
    %1 = vector.shape_cast %0 : vector<1x8x128xf32> to vector<8x128xf32>
    %c0_2 = arith.constant 0 : index
    %c0_3 = arith.constant 0 : index
    %2 = vector.load %arg3[%c0_2, %c0_3] : memref<128x256xf32, #tpu.memory_space<vmem>>, vector<128x256xf32>
    %cst = arith.constant dense<0.000000e+00> : vector<8x256xf32>
    %3 = tpu.matmul %1, %2, %cst {dimension_numbers = #tpu.dot_dimension_numbers<[1], [0], [0], [1], [0, 0, 1, 1], [], []>} : vector<8x128xf32>, vector<128x256xf32>, vector<8x256xf32> -> vector<8x256xf32>
    %4 = vector.extract_strided_slice %3 {offsets = [0, 0], sizes = [8, 128], strides = [1, 1]} : vector<8x256xf32> to vector<8x128xf32>
    %c0_4 = arith.constant 0 : index
    %c0_5 = arith.constant 0 : index
    %5 = vector.load %arg4[%c0_4, %c0_5] : memref<1x128xf32, #tpu.memory_space<vmem>>, vector<1x128xf32>
    %6 = vector.broadcast %5 : vector<1x128xf32> to vector<8x128xf32>
    %7 = arith.addf %4, %6 : vector<8x128xf32>
    %cst_6 = arith.constant 0.000000e+00 : f32
    %8 = vector.broadcast %cst_6 : f32 to vector<8x128xf32>
    %9 = arith.maximumf %7, %8 : vector<8x128xf32>
    %c0_7 = arith.constant 0 : index
    %c0_8 = arith.constant 0 : index
    %c0_9 = arith.constant 0 : index
    %10 = vector.load %arg2[%c0_7, %c0_8, %c0_9] : memref<1x8x8xf32, #tpu.memory_space<vmem>>, vector<1x8x8xf32>
    %11 = vector.shape_cast %10 : vector<1x8x8xf32> to vector<8x8xf32>
    %cst_10 = arith.constant dense<0.000000e+00> : vector<8x128xf32>
    %12 = tpu.matmul %11, %9, %cst_10 {dimension_numbers = #tpu.dot_dimension_numbers<[1], [0], [0], [1], [0, 0, 1, 1], [], []>} : vector<8x8xf32>, vector<8x128xf32>, vector<8x128xf32> -> vector<8x128xf32>
    %c0_11 = arith.constant 0 : index
    %c0_12 = arith.constant 0 : index
    %c0_13 = arith.constant 0 : index
    %13 = vector.load %arg5[%c0_11, %c0_12, %c0_13] : memref<1x8x128xf32, #tpu.memory_space<vmem>>, vector<1x8x128xf32>
    %14 = vector.shape_cast %13 : vector<1x8x128xf32> to vector<8x128xf32>
    %15 = vector.shape_cast %12 : vector<8x128xf32> to vector<1x8x128xf32>
    tpu.vector_store %arg5[%c0_11, %c0_12, %c0_13], %15 {strides = array<i32>} : memref<1x8x128xf32, #tpu.memory_space<vmem>>, vector<1x8x128xf32>,
    %16 = vector.extract_strided_slice %3 {offsets = [0, 128], sizes = [8, 128], strides = [1, 1]} : vector<8x256xf32> to vector<8x128xf32>
    %c0_14 = arith.constant 0 : index
    %c0_15 = arith.constant 0 : index
    %c0_16 = arith.constant 0 : index
    %17 = vector.load %arg6[%c0_14, %c0_15, %c0_16] : memref<1x8x128xf32, #tpu.memory_space<vmem>>, vector<1x8x128xf32>
    %18 = vector.shape_cast %17 : vector<1x8x128xf32> to vector<8x128xf32>
    %19 = vector.shape_cast %16 : vector<8x128xf32> to vector<1x8x128xf32>
    tpu.vector_store %arg6[%c0_14, %c0_15, %c0_16], %19 {strides = array<i32>} : memref<1x8x128xf32, #tpu.memory_space<vmem>>, vector<1x8x128xf32>,
    return
  }
  func.func @transform_0(%arg0: i32) -> (i32, i32, i32) {
    %c0_i32 = arith.constant 0 : i32
    %c0_i32_0 = arith.constant 0 : i32
    %c0_i32_1 = arith.constant 0 : i32
    return %arg0, %c0_i32, %c0_i32_0 : i32, i32, i32
  }
  func.func @transform_1(%arg0: i32) -> (i32, i32, i32) {
    %c0_i32 = arith.constant 0 : i32
    %c0_i32_0 = arith.constant 0 : i32
    %c0_i32_1 = arith.constant 0 : i32
    return %arg0, %c0_i32, %c0_i32_0 : i32, i32, i32
  }
  func.func @transform_2(%arg0: i32) -> (i32, i32) {
    %c0_i32 = arith.constant 0 : i32
    %c0_i32_0 = arith.constant 0 : i32
    %c0_i32_1 = arith.constant 0 : i32
    return %c0_i32, %c0_i32_0 : i32, i32
  }
  func.func @transform_3(%arg0: i32) -> (i32, i32) {
    %c0_i32 = arith.constant 0 : i32
    %c0_i32_0 = arith.constant 0 : i32
    %c0_i32_1 = arith.constant 0 : i32
    return %c0_i32, %c0_i32_0 : i32, i32
  }
  func.func @transform_4(%arg0: i32) -> (i32, i32, i32) {
    %c0_i32 = arith.constant 0 : i32
    %c0_i32_0 = arith.constant 0 : i32
    %c0_i32_1 = arith.constant 0 : i32
    return %arg0, %c0_i32, %c0_i32_0 : i32, i32, i32
  }
  func.func @transform_5(%arg0: i32) -> (i32, i32, i32) {
    %c0_i32 = arith.constant 0 : i32
    %c0_i32_0 = arith.constant 0 : i32
    %c0_i32_1 = arith.constant 0 : i32
    return %arg0, %c0_i32, %c0_i32_0 : i32, i32, i32
  }
}

</mosaic_0001>

<llo_original>
// kernel: tpu_custom_call.1
$region0: #{tpu_custom_call.1}
  #allocation0 [shape = 'u32[]', space=smem, size = 0x4, offset = 0x4, fixed_abs, tag = 'smem constant byte address 0x4 - core index']
  #allocation1 [shape = 'u32[144,128]{1,0:T(1,128)}', space=vmem, size = 0x12000, scoped, tag = 'internal scratch']
  %s0 = inlined_call_operand.hbm [shape: f32[2,8,128], index: 0, kind: input, shape index: {}]
  %s1 = inlined_call_operand.hbm [shape: f32[2,8,8], index: 1, kind: input, shape index: {}]
  %s2 = inlined_call_operand.hbm [shape: f32[128,256], index: 2, kind: input, shape index: {}]
  %s3 = inlined_call_operand.vmem [shape: f32[1,128], index: 3, kind: input, shape index: {}]
  %s4 = inlined_call_operand.hbm [shape: f32[2,8,128], index: 4, kind: output, shape index: {0}]
  %s5 = inlined_call_operand.hbm [shape: f32[2,8,128], index: 5, kind: output, shape index: {1}]
  %6 = xla_tuple %s4, %s5
  %s7 = sld [smem:[#allocation0]]
  $region69: #{tpu_custom_call.1} parent=0
    _
  %s9 = ssub.s32 1, %s7
  %s10 = scalar_select 0, %s9, %s7
  $region1: #{tpu_custom_call.1} parent=0
    #allocation2 [shape = 'u8[8192]{0}', space=vmem, size = 0x2000, scoped, tag = 'input window, operand 0']
    #allocation3 [shape = 's32[2]{0}', space=sflag, size = 0x8, scoped, tag = 'scoped memory for tpu_custom_call.1']
    #allocation4 [shape = 's32[2]{0}', space=sflag, size = 0x8, scoped, tag = 'scoped memory for tpu_custom_call.1']
    #allocation5 [shape = 'u8[8192]{0}', space=vmem, size = 0x2000, scoped, tag = 'input window, operand 1']
    #allocation6 [shape = 's32[2]{0}', space=sflag, size = 0x8, scoped, tag = 'scoped memory for tpu_custom_call.1']
    #allocation7 [shape = 'u8[131072]{0}', space=vmem, size = 0x20000, scoped, tag = 'input window, operand 2, single buffered']
    #allocation8 [shape = 'u8[8192]{0}', space=vmem, size = 0x2000, scoped, tag = 'output window, operand 0']
    #allocation9 [shape = 'u8[8192]{0}', space=vmem, size = 0x2000, scoped, tag = 'output window, operand 1']
    #allocation10 [shape = 's32[2]{0}', space=sflag, size = 0x8, scoped, tag = 'scoped memory for tpu_custom_call.1']
    %11 = vsyncpa [#allocation3], 0
    %s12 = scalar_lea.sflag [#allocation3], 1
    %13 = vsyncpa %s12, 0
    %14 = vsyncpa [#allocation6], 0
    %s15 = scalar_lea.sflag [#allocation6], 1
    %16 = vsyncpa %s15, 0
    %17 = vsyncpa [#allocation4], 0
    %s18 = scalar_lea.sflag [#allocation4], 1
    %19 = vsyncpa %s18, 0
    %20 = vsyncpa [#allocation10], 0
    %s21 = scalar_lea.sflag [#allocation10], 1
    %22 = vsyncpa %s21, 0
    loop: start=0, step=1, limit=4
    $region2: #{tpu_custom_call.1} parent=1 // loop_pre_header
      _
    $region3: #{tpu_custom_call.1} parent=1 // loop_header
      %s24 = sphi 0, %s28
      %p25 = scmp.ge.s32.totalorder %s24, 4
      %s34 = sphi 0, %s36
      %s37 = sphi 0, %s34
      %s38 = sphi 0, %s37
      %s54 = sphi 0, %s38
      %s60 = sphi 0, %s62
      %s63 = sphi 0, %s60
      %s64 = sphi 0, %s63
      %s80 = sphi 0, %s64
      %s84 = sphi 0, %s84
      %s86 = sphi 0, %s84
      %s87 = sphi 0, %s86
      %s101 = sphi 0, %s87
      %s105 = sphi 0, %s105
      %s107 = sphi 0, %s105
      %s108 = sphi 0, %s107
      %s122 = sphi 0, %s108
      %s128 = sphi 0, %s130
      %s131 = sphi 0, %s128
      %s132 = sphi 0, %s131
      %s148 = sphi 0, %s132
      %s154 = sphi 0, %s156
      %s157 = sphi 0, %s154
      %s158 = sphi 0, %s157
      %s174 = sphi 0, %s158
    $region4: #{tpu_custom_call.1} parent=1 // loop_header_branch
      %27 = sbr.rel (%p25) target = $region8
    $region5: #{tpu_custom_call.1} parent=1 // loop_body
      %s29 = ssub.s32 %s24, 1
      %s30 = ssub.s32 %s24, 2
      %s31 = sadd.s32 %s24, 1
      %s32 = ssub.s32 %s24, %s31
      %p33 = scmp.eq.s32.totalorder %s32, 0
      %s35 = sadd.s32 %s34, 1
      %s36 = scalar_select %p33, %s34, %s35
      %p39 = pneg %p33
      %p40 = scmp.eq.s32.totalorder %s24, 1
      %p41 = por %p39, %p40
      %p42 = scmp.ne.s32.totalorder %s34, %s37
      %p43 = scmp.eq.s32.totalorder %s24, 0
      %p44 = por %p42, %p43
      %p45 = scmp.ne.s32.totalorder %s34, %s37
      %p46 = scmp.eq.s32.totalorder %s29, 1
      %p47 = por %p45, %p46
      %p48 = scmp.ne.s32.totalorder %s37, %s38
      %p49 = scmp.eq.s32.totalorder %s29, 0
      %p50 = por %p48, %p49
      %p51 = scmp.ne.s32.totalorder %s37, %s38
      %p52 = scmp.eq.s32.totalorder %s30, 1
      %p53 = por %p51, %p52
      %p55 = scmp.ne.s32.totalorder %s38, %s54
      %p56 = scmp.eq.s32.totalorder %s30, 0
      %p57 = por %p55, %p56
      %s58 = ssub.s32 %s24, %s31
      %p59 = scmp.eq.s32.totalorder %s58, 0
      %s61 = sadd.s32 %s60, 1
      %s62 = scalar_select %p59, %s60, %s61
      %p65 = pneg %p59
      %p66 = scmp.eq.s32.totalorder %s24, 1
      %p67 = por %p65, %p66
      %p68 = scmp.ne.s32.totalorder %s60, %s63
      %p69 = scmp.eq.s32.totalorder %s24, 0
      %p70 = por %p68, %p69
      %p71 = scmp.ne.s32.totalorder %s60, %s63
      %p72 = scmp.eq.s32.totalorder %s29, 1
      %p73 = por %p71, %p72
      %p74 = scmp.ne.s32.totalorder %s63, %s64
      %p75 = scmp.eq.s32.totalorder %s29, 0
      %p76 = por %p74, %p75
      %p77 = scmp.ne.s32.totalorder %s63, %s64
      %p78 = scmp.eq.s32.totalorder %s30, 1
      %p79 = por %p77, %p78
      %p81 = scmp.ne.s32.totalorder %s64, %s80
      %p82 = scmp.eq.s32.totalorder %s30, 0
      %p83 = por %p81, %p82
      %s85 = sadd.s32 %s84, 1
      %p88 = scmp.eq.s32.totalorder %s24, 1
      %p89 = scmp.ne.s32.totalorder %s84, %s86
      %p90 = scmp.eq.s32.totalorder %s24, 0
      %p91 = por %p89, %p90
      %p92 = scmp.ne.s32.totalorder %s84, %s86
      %p93 = scmp.eq.s32.totalorder %s29, 1
      %p94 = por %p92, %p93
      %p95 = scmp.ne.s32.totalorder %s86, %s87
      %p96 = scmp.eq.s32.totalorder %s29, 0
      %p97 = por %p95, %p96
      %p98 = scmp.ne.s32.totalorder %s86, %s87
      %p99 = scmp.eq.s32.totalorder %s30, 1
      %p100 = por %p98, %p99
      %p102 = scmp.ne.s32.totalorder %s87, %s101
      %p103 = scmp.eq.s32.totalorder %s30, 0
      %p104 = por %p102, %p103
      %s106 = sadd.s32 %s105, 1
      %p109 = scmp.eq.s32.totalorder %s24, 1
      %p110 = scmp.ne.s32.totalorder %s105, %s107
      %p111 = scmp.eq.s32.totalorder %s24, 0
      %p112 = por %p110, %p111
      %p113 = scmp.ne.s32.totalorder %s105, %s107
      %p114 = scmp.eq.s32.totalorder %s29, 1
      %p115 = por %p113, %p114
      %p116 = scmp.ne.s32.totalorder %s107, %s108
      %p117 = scmp.eq.s32.totalorder %s29, 0
      %p118 = por %p116, %p117
      %p119 = scmp.ne.s32.totalorder %s107, %s108
      %p120 = scmp.eq.s32.totalorder %s30, 1
      %p121 = por %p119, %p120
      %p123 = scmp.ne.s32.totalorder %s108, %s122
      %p124 = scmp.eq.s32.totalorder %s30, 0
      %p125 = por %p123, %p124
      %s126 = ssub.s32 %s24, %s31
      %p127 = scmp.eq.s32.totalorder %s126, 0
      %s129 = sadd.s32 %s128, 1
      %s130 = scalar_select %p127, %s128, %s129
      %p133 = pneg %p127
      %p134 = scmp.eq.s32.totalorder %s24, 1
      %p135 = por %p133, %p134
      %p136 = scmp.ne.s32.totalorder %s128, %s131
      %p137 = scmp.eq.s32.totalorder %s24, 0
      %p138 = por %p136, %p137
      %p139 = scmp.ne.s32.totalorder %s128, %s131
      %p140 = scmp.eq.s32.totalorder %s29, 1
      %p141 = por %p139, %p140
      %p142 = scmp.ne.s32.totalorder %s131, %s132
      %p143 = scmp.eq.s32.totalorder %s29, 0
      %p144 = por %p142, %p143
      %p145 = scmp.ne.s32.totalorder %s131, %s132
      %p146 = scmp.eq.s32.totalorder %s30, 1
      %p147 = por %p145, %p146
      %p149 = scmp.ne.s32.totalorder %s132, %s148
      %p150 = scmp.eq.s32.totalorder %s30, 0
      %p151 = por %p149, %p150
      %s152 = ssub.s32 %s24, %s31
      %p153 = scmp.eq.s32.totalorder %s152, 0
      %s155 = sadd.s32 %s154, 1
      %s156 = scalar_select %p153, %s154, %s155
      %p159 = pneg %p153
      %p160 = scmp.eq.s32.totalorder %s24, 1
      %p161 = por %p159, %p160
      %p162 = scmp.ne.s32.totalorder %s154, %s157
      %p163 = scmp.eq.s32.totalorder %s24, 0
      %p164 = por %p162, %p163
      %p165 = scmp.ne.s32.totalorder %s154, %s157
      %p166 = scmp.eq.s32.totalorder %s29, 1
      %p167 = por %p165, %p166
      %p168 = scmp.ne.s32.totalorder %s157, %s158
      %p169 = scmp.eq.s32.totalorder %s29, 0
      %p170 = por %p168, %p169
      %p171 = scmp.ne.s32.totalorder %s157, %s158
      %p172 = scmp.eq.s32.totalorder %s30, 1
      %p173 = por %p171, %p172
      %p175 = scmp.ne.s32.totalorder %s158, %s174
      %p176 = scmp.eq.s32.totalorder %s30, 0
      %p177 = por %p175, %p176
      %p178 = scmp.le.s32.totalorder 1, %s24
      %p179 = scmp.lt.s32.totalorder %s24, 3
      %p180 = pnand %p178, %p179
      %p181 = pneg %p180
      // Predicated region
      $region9: #{tpu_custom_call.1} parent=5 // pred_check
        _
      $region10: #{tpu_custom_call.1} parent=5 // pred_check_branch
        %183 = sbr.rel (%p180) target = $region12
      $region11: #{tpu_custom_call.1} parent=5 // pred_region
        %s184 = ssub.s32 %s24, 1
        // Predicated region
        $region13: #{tpu_custom_call.1} parent=11 // pred_check
          %p185 = pneg %p97
        $region14: #{tpu_custom_call.1} parent=11 // pred_check_branch
          %187 = sbr.rel (%p185) target = $region16
        $region15: #{tpu_custom_call.1} parent=11 // pred_region
          %s189 = ssub.s32 4096, 4096
          %190 = vsyncadd [#allocation6], %s189
          %s191 = sshll.u32 [#allocation7], 4
          %s192 = int_to_ptr.vmem [resolvable:$true] %s191
          %197 = dma.hbm_to_vmem [thread:$0]  %s2, 4096, %s192, [#allocation6], 256, 256, 16
        $region16: #{tpu_custom_call.1} parent=11 // pred_fallthru
          _
        // Predicated region
        $region17: #{tpu_custom_call.1} parent=11 // pred_check
          %p198 = pneg %p118
        $region18: #{tpu_custom_call.1} parent=11 // pred_check_branch
          %200 = sbr.rel (%p198) target = $region20
        $region19: #{tpu_custom_call.1} parent=11 // pred_region
          _
        $region20: #{tpu_custom_call.1} parent=11 // pred_fallthru
          _
      $region12: #{tpu_custom_call.1} parent=5 // pred_fallthru
        _
      %p201 = scmp.lt.s32.totalorder %s24, 2
      // Predicated region
      $region21: #{tpu_custom_call.1} parent=5 // pred_check
        %p202 = pneg %p201
      $region22: #{tpu_custom_call.1} parent=5 // pred_check_branch
        %204 = sbr.rel (%p202) target = $region24
      $region23: #{tpu_custom_call.1} parent=5 // pred_region
        // Predicated region
        $region25: #{tpu_custom_call.1} parent=23 // pred_check
          %p205 = pneg %p44
        $region26: #{tpu_custom_call.1} parent=23 // pred_check_branch
          %207 = sbr.rel (%p205) target = $region28
        $region27: #{tpu_custom_call.1} parent=23 // pred_region
          %s208 = sand.u32 %s34, 1
          %s209 = scalar_lea.sflag [#allocation3], %s208
          %s210 = sand.u32 %s34, 1
          %s211 = smul.addr %s210, 8
          %s212 = scalar_lea.vmem [#allocation2], %s211
          %s214 = ssub.s32 128, 128
          %215 = vsyncadd %s209, %s214
          %s216 = smul.addr %s24, 128
          %s217 = scalar_lea.hbm %s0, %s216
          %s219 = sshll.u32 %s212, 4
          %s220 = int_to_ptr.vmem [resolvable:$true] %s219
          %222 = dma.hbm_to_vmem [thread:$0]  %s217, 128, %s220, %s209
        $region28: #{tpu_custom_call.1} parent=23 // pred_fallthru
          _
        // Predicated region
        $region29: #{tpu_custom_call.1} parent=23 // pred_check
          %p223 = pneg %p70
        $region30: #{tpu_custom_call.1} parent=23 // pred_check_branch
          %225 = sbr.rel (%p223) target = $region32
        $region31: #{tpu_custom_call.1} parent=23 // pred_region
          %s226 = sand.u32 %s24, 1
          %s227 = scalar_lea.sflag [#allocation6], %s226
          %s228 = sand.u32 %s60, 1
          %s229 = smul.addr %s228, 8
          %s230 = scalar_lea.vmem [#allocation5], %s229
          %s232 = ssub.s32 128, 128
          %233 = vsyncadd %s227, %s232
          %s234 = smul.addr %s24, 128
          %s235 = scalar_lea.hbm %s1, %s234
          %s237 = sshll.u32 %s230, 4
          %s238 = int_to_ptr.vmem [resolvable:$true] %s237
          %240 = dma.hbm_to_vmem [thread:$0]  %s235, 128, %s238, %s227
        $region32: #{tpu_custom_call.1} parent=23 // pred_fallthru
          _
      $region24: #{tpu_custom_call.1} parent=5 // pred_fallthru
        _
      %p241 = scmp.le.s32.totalorder 1, %s24
      %p242 = scmp.lt.s32.totalorder %s24, 3
      %p243 = pnand %p241, %p242
      %p244 = pneg %p243
      // Predicated region
      $region33: #{tpu_custom_call.1} parent=5 // pred_check
        _
      $region34: #{tpu_custom_call.1} parent=5 // pred_check_branch
        %246 = sbr.rel (%p243) target = $region36
      $region35: #{tpu_custom_call.1} parent=5 // pred_region
        %s247 = ssub.s32 %s24, 1
        %s248 = sand.u32 %s37, 1
        %s249 = scalar_lea.sflag [#allocation3], %s248
        %s250 = sand.u32 %s37, 1
        %s251 = smul.addr %s250, 8
        %s252 = scalar_lea.vmem [#allocation2], %s251
        // Predicated region
        $region37: #{tpu_custom_call.1} parent=35 // pred_check
          %p253 = pneg %p50
        $region38: #{tpu_custom_call.1} parent=35 // pred_check_branch
          %255 = sbr.rel (%p253) target = $region40
        $region39: #{tpu_custom_call.1} parent=35 // pred_region
          %256 = dma.done %s249, 128
        $region40: #{tpu_custom_call.1} parent=35 // pred_fallthru
          _
        %s257 = sand.u32 %s29, 1
        %s258 = scalar_lea.sflag [#allocation6], %s257
        %s259 = sand.u32 %s63, 1
        %s260 = smul.addr %s259, 8
        %s261 = scalar_lea.vmem [#allocation5], %s260
        // Predicated region
        $region41: #{tpu_custom_call.1} parent=35 // pred_check
          %p262 = pneg %p76
        $region42: #{tpu_custom_call.1} parent=35 // pred_check_branch
          %264 = sbr.rel (%p262) target = $region44
        $region43: #{tpu_custom_call.1} parent=35 // pred_region
          %265 = dma.done %s258, 128
        $region44: #{tpu_custom_call.1} parent=35 // pred_fallthru
          _
        // Predicated region
        $region45: #{tpu_custom_call.1} parent=35 // pred_check
          %p266 = pneg %p97
        $region46: #{tpu_custom_call.1} parent=35 // pred_check_branch
          %268 = sbr.rel (%p266) target = $region48
        $region47: #{tpu_custom_call.1} parent=35 // pred_region
          %269 = dma.done [#allocation6], 4096
        $region48: #{tpu_custom_call.1} parent=35 // pred_fallthru
          _
        %s270 = sand.u32 %s37, 1
        %s271 = scalar_lea.sflag [#allocation3], %s270
        %s272 = sand.u32 %s37, 1
        %s273 = smul.addr %s272, 8
        %s274 = scalar_lea.vmem [#allocation2], %s273
        %p275 = pneg %p50
        %p276 = pneg %p47
        %s277 = sand.u32 %s29, 1
        %s278 = scalar_lea.sflag [#allocation6], %s277
        %s279 = sand.u32 %s63, 1
        %s280 = smul.addr %s279, 8
        %s281 = scalar_lea.vmem [#allocation5], %s280
        %p282 = pneg %p76
        %p283 = pneg %p73
        %p284 = pneg %p97
        %p285 = pneg %p94
        %p286 = pneg %p118
        %p287 = pneg %p115
        %p288 = pneg %p144
        %p289 = pneg %p141
        %s290 = sand.u32 %s131, 1
        %s291 = scalar_lea.sflag [#allocation4], %s290
        %s292 = sand.u32 %s131, 1
        %s293 = smul.addr %s292, 8
        %s294 = scalar_lea.vmem [#allocation8], %s293
        %p295 = pneg %p170
        %p296 = pneg %p167
        %s297 = sand.u32 %s157, 1
        %s298 = scalar_lea.sflag [#allocation10], %s297
        %s299 = sand.u32 %s157, 1
        %s300 = smul.addr %s299, 8
        %s301 = scalar_lea.vmem [#allocation9], %s300
        %v302 = vld [vmem:[%s252] sm:$0xff]
        %v303 = vld [vmem:[#allocation7] sm:$0xff]
        %v304 = vld [vmem:[#allocation7 + $0x8] sm:$0xff]
        %v305 = vld [vmem:[#allocation7 + $0x10] sm:$0xff]
        %v306 = vld [vmem:[#allocation7 + $0x18] sm:$0xff]
        %v307 = vld [vmem:[#allocation7 + $0x20] sm:$0xff]
        %v308 = vld [vmem:[#allocation7 + $0x28] sm:$0xff]
        %v309 = vld [vmem:[#allocation7 + $0x30] sm:$0xff]
        %v310 = vld [vmem:[#allocation7 + $0x38] sm:$0xff]
        %v311 = vld [vmem:[#allocation7 + $0x40] sm:$0xff]
        %v312 = vld [vmem:[#allocation7 + $0x48] sm:$0xff]
        %v313 = vld [vmem:[#allocation7 + $0x50] sm:$0xff]
        %v314 = vld [vmem:[#allocation7 + $0x58] sm:$0xff]
        %v315 = vld [vmem:[#allocation7 + $0x60] sm:$0xff]
        %v316 = vld [vmem:[#allocation7 + $0x68] sm:$0xff]
        %v317 = vld [vmem:[#allocation7 + $0x70] sm:$0xff]
        %v318 = vld [vmem:[#allocation7 + $0x78] sm:$0xff]
        %v319 = vld [vmem:[#allocation7 + $0x80] sm:$0xff]
        %v320 = vld [vmem:[#allocation7 + $0x88] sm:$0xff]
        %v321 = vld [vmem:[#allocation7 + $0x90] sm:$0xff]
        %v322 = vld [vmem:[#allocation7 + $0x98] sm:$0xff]
        %v323 = vld [vmem:[#allocation7 + $0xa0] sm:$0xff]
        %v324 = vld [vmem:[#allocation7 + $0xa8] sm:$0xff]
        %v325 = vld [vmem:[#allocation7 + $0xb0] sm:$0xff]
        %v326 = vld [vmem:[#allocation7 + $0xb8] sm:$0xff]
        %v327 = vld [vmem:[#allocation7 + $0xc0] sm:$0xff]
        %v328 = vld [vmem:[#allocation7 + $0xc8] sm:$0xff]
        %v329 = vld [vmem:[#allocation7 + $0xd0] sm:$0xff]
        %v330 = vld [vmem:[#allocation7 + $0xd8] sm:$0xff]
        %v331 = vld [vmem:[#allocation7 + $0xe0] sm:$0xff]
        %v332 = vld [vmem:[#allocation7 + $0xe8] sm:$0xff]
        %v333 = vld [vmem:[#allocation7 + $0xf0] sm:$0xff]
        %v334 = vld [vmem:[#allocation7 + $0xf8] sm:$0xff]
        %335 = vmatprep.subr.mxu0 %v304
        %336 = vmatpush1.msra.mxu0 %v303
        %337 = vmatprep.subr.mxu0 %v306
        %338 = vmatpush1.msra.mxu0 %v305
        %339 = vmatprep.subr.mxu0 %v308
        %340 = vmatpush1.msra.mxu0 %v307
        %341 = vmatprep.subr.mxu0 %v310
        %342 = vmatpush1.msra.mxu0 %v309
        %343 = vmatprep.subr.mxu0 %v312
        %344 = vmatpush1.msra.mxu0 %v311
        %345 = vmatprep.subr.mxu0 %v314
        %346 = vmatpush1.msra.mxu0 %v313
        %347 = vmatprep.subr.mxu0 %v316
        %348 = vmatpush1.msra.mxu0 %v315
        %349 = vmatprep.subr.mxu0 %v318
        %350 = vmatpush1.msra.mxu0 %v317
        %351 = vmatprep.subr.mxu0 %v320
        %352 = vmatpush1.msra.mxu0 %v319
        %353 = vmatprep.subr.mxu0 %v322
        %354 = vmatpush1.msra.mxu0 %v321
        %355 = vmatprep.subr.mxu0 %v324
        %356 = vmatpush1.msra.mxu0 %v323
        %357 = vmatprep.subr.mxu0 %v326
        %358 = vmatpush1.msra.mxu0 %v325
        %359 = vmatprep.subr.mxu0 %v328
        %360 = vmatpush1.msra.mxu0 %v327
        %361 = vmatprep.subr.mxu0 %v330
        %362 = vmatpush1.msra.mxu0 %v329
        %363 = vmatprep.subr.mxu0 %v332
        %364 = vmatpush1.msra.mxu0 %v331
        %365 = vmatprep.subr.mxu0 %v334
        %366 = vmatpush1.msra.mxu0 %v333
        %367 = vmatprep.subr.mxu0 0.0
        %368 = vmatpush1.msra.mxu0 0.0
        %369 = vmatprep.subr.mxu0 0.0
        %370 = vmatpush1.msra.mxu0 0.0
        %371 = vmatprep.subr.mxu0 0.0
        %372 = vmatpush1.msra.mxu0 0.0
        %373 = vmatprep.subr.mxu0 0.0
        %374 = vmatpush1.msra.mxu0 0.0
        %375 = vmatprep.subr.mxu0 0.0
        %376 = vmatpush1.msra.mxu0 0.0
        %377 = vmatprep.subr.mxu0 0.0
        %378 = vmatpush1.msra.mxu0 0.0
        %379 = vmatprep.subr.mxu0 0.0
        %380 = vmatpush1.msra.mxu0 0.0
        %381 = vmatprep.subr.mxu0 0.0
        %382 = vmatpush1.msra.mxu0 0.0
        %383 = vmatprep.subr.mxu0 0.0
        %384 = vmatpush1.msra.mxu0 0.0
        %385 = vmatprep.subr.mxu0 0.0
        %386 = vmatpush1.msra.mxu0 0.0
        %387 = vmatprep.subr.mxu0 0.0
        %388 = vmatpush1.msra.mxu0 0.0
        %389 = vmatprep.subr.mxu0 0.0
        %390 = vmatpush1.msra.mxu0 0.0
        %391 = vmatprep.subr.mxu0 0.0
        %392 = vmatpush1.msra.mxu0 0.0
        %393 = vmatprep.subr.mxu0 0.0
        %394 = vmatpush1.msra.mxu0 0.0
        %395 = vmatprep.subr.mxu0 0.0
        %396 = vmatpush1.msra.mxu0 0.0
        %397 = vmatprep.subr.mxu0 0.0
        %398 = vmatpush1.msra.mxu0 0.0
        %399 = vmatprep.mubr.f32.mxu0 0.0
        %400 = vmatmul.mubr.f32.gmra.mrb[0].mxu0 %v302
        %v401 = vpop.f32.mrb[0].mxu0
        %v402 = vadd.f32 0.0, %v401
        %v403 = vpop.f32.mrb[0].mxu0
        %v404 = vadd.f32 0.0, %v403
        %405 = vdwg.mxu0
        %v406 = vld [vmem:[%s3] sm:$0x1]
        %v408 = vlaneseq
        %v409 = vshrl.u32 %v408, 7
        %v410 = vsub.s32 0, %v409
        %v411 = vrot.slane %v406, %v410
        %v413 = vadd.f32 %v402, %v411
        %v414 = vmax.f32 %v413, 0.0
        %v415 = vld [vmem:[%s261] sm:$0xff]
        %vm416 = vcmask 64512
        %v418 = vsel %vm416, %v415, 0
        %420 = vmatprep.subr.mxu0 0.0
        %421 = vmatpush1.msra.mxu0 %v414
        %422 = vmatprep.subr.mxu0 0.0
        %423 = vmatpush1.msra.mxu0 0.0
        %424 = vmatprep.subr.mxu0 0.0
        %425 = vmatpush1.msra.mxu0 0.0
        %426 = vmatprep.subr.mxu0 0.0
        %427 = vmatpush1.msra.mxu0 0.0
        %428 = vmatprep.subr.mxu0 0.0
        %429 = vmatpush1.msra.mxu0 0.0
        %430 = vmatprep.subr.mxu0 0.0
        %431 = vmatpush1.msra.mxu0 0.0
        %432 = vmatprep.subr.mxu0 0.0
        %433 = vmatpush1.msra.mxu0 0.0
        %434 = vmatprep.subr.mxu0 0.0
        %435 = vmatpush1.msra.mxu0 0.0
        %436 = vmatprep.subr.mxu0 0.0
        %437 = vmatpush1.msra.mxu0 0.0
        %438 = vmatprep.subr.mxu0 0.0
        %439 = vmatpush1.msra.mxu0 0.0
        %440 = vmatprep.subr.mxu0 0.0
        %441 = vmatpush1.msra.mxu0 0.0
        %442 = vmatprep.subr.mxu0 0.0
        %443 = vmatpush1.msra.mxu0 0.0
        %444 = vmatprep.subr.mxu0 0.0
        %445 = vmatpush1.msra.mxu0 0.0
        %446 = vmatprep.subr.mxu0 0.0
        %447 = vmatpush1.msra.mxu0 0.0
        %448 = vmatprep.subr.mxu0 0.0
        %449 = vmatpush1.msra.mxu0 0.0
        %450 = vmatprep.subr.mxu0 0.0
        %451 = vmatpush1.msra.mxu0 0.0
        %452 = vmatprep.subr.mxu0 0.0
        %453 = vmatpush1.msra.mxu0 0.0
        %454 = vmatprep.subr.mxu0 0.0
        %455 = vmatpush1.msra.mxu0 0.0
        %456 = vmatprep.subr.mxu0 0.0
        %457 = vmatpush1.msra.mxu0 0.0
        %458 = vmatprep.subr.mxu0 0.0
        %459 = vmatpush1.msra.mxu0 0.0
        %460 = vmatprep.subr.mxu0 0.0
        %461 = vmatpush1.msra.mxu0 0.0
        %462 = vmatprep.subr.mxu0 0.0
        %463 = vmatpush1.msra.mxu0 0.0
        %464 = vmatprep.subr.mxu0 0.0
        %465 = vmatpush1.msra.mxu0 0.0
        %466 = vmatprep.subr.mxu0 0.0
        %467 = vmatpush1.msra.mxu0 0.0
        %468 = vmatprep.subr.mxu0 0.0
        %469 = vmatpush1.msra.mxu0 0.0
        %470 = vmatprep.subr.mxu0 0.0
        %471 = vmatpush1.msra.mxu0 0.0
        %472 = vmatprep.subr.mxu0 0.0
        %473 = vmatpush1.msra.mxu0 0.0
        %474 = vmatprep.subr.mxu0 0.0
        %475 = vmatpush1.msra.mxu0 0.0
        %476 = vmatprep.subr.mxu0 0.0
        %477 = vmatpush1.msra.mxu0 0.0
        %478 = vmatprep.subr.mxu0 0.0
        %479 = vmatpush1.msra.mxu0 0.0
        %480 = vmatprep.subr.mxu0 0.0
        %481 = vmatpush1.msra.mxu0 0.0
        %482 = vmatprep.subr.mxu0 0.0
        %483 = vmatpush1.msra.mxu0 0.0
        %484 = vmatprep.mubr.f32.mxu0 0.0
        %485 = vmatmul.mubr.f32.gmra.mrb[0].mxu0 %v418
        %v486 = vpop.f32.mrb[0].mxu0
        %v487 = vadd.f32 0.0, %v486
        %v488 = vpop.f32.mrb[0].mxu0
        %489 = vdwg.mxu0
        %490 = vst [vmem:[%s294] sm:$0xff] %v487
        %491 = vst [vmem:[%s301] sm:$0xff] %v404
        %s492 = sand.u32 %s131, 1
        %s493 = scalar_lea.sflag [#allocation4], %s492
        %s494 = sand.u32 %s131, 1
        %s495 = smul.addr %s494, 8
        %s496 = scalar_lea.vmem [#allocation8], %s495
        %s497 = sand.u32 %s157, 1
        %s498 = scalar_lea.sflag [#allocation10], %s497
        %s499 = sand.u32 %s157, 1
        %s500 = smul.addr %s499, 8
        %s501 = scalar_lea.vmem [#allocation9], %s500
        // Predicated region
        $region49: #{tpu_custom_call.1} parent=35 // pred_check
          %p502 = pneg %p141
        $region50: #{tpu_custom_call.1} parent=35 // pred_check_branch
          %504 = sbr.rel (%p502) target = $region52
        $region51: #{tpu_custom_call.1} parent=35 // pred_region
          %s506 = ssub.s32 128, 128
          %507 = vsyncadd %s493, %s506
          %s508 = smul.addr %s29, 128
          %s509 = scalar_lea.hbm %s4, %s508
          %s511 = sshll.u32 %s496, 4
          %s512 = int_to_ptr.vmem [resolvable:$true] %s511
          %514 = dma.vmem_to_hbm [thread:$0]  %s512, 128, %s509, %s493
        $region52: #{tpu_custom_call.1} parent=35 // pred_fallthru
          _
        // Predicated region
        $region53: #{tpu_custom_call.1} parent=35 // pred_check
          %p515 = pneg %p167
        $region54: #{tpu_custom_call.1} parent=35 // pred_check_branch
          %517 = sbr.rel (%p515) target = $region56
        $region55: #{tpu_custom_call.1} parent=35 // pred_region
          %s519 = ssub.s32 128, 128
          %520 = vsyncadd %s498, %s519
          %s521 = smul.addr %s29, 128
          %s522 = scalar_lea.hbm %s5, %s521
          %s524 = sshll.u32 %s501, 4
          %s525 = int_to_ptr.vmem [resolvable:$true] %s524
          %527 = dma.vmem_to_hbm [thread:$0]  %s525, 128, %s522, %s498
        $region56: #{tpu_custom_call.1} parent=35 // pred_fallthru
          _
      $region36: #{tpu_custom_call.1} parent=5 // pred_fallthru
        _
      %p528 = scmp.le.s32.totalorder 2, %s24
      // Predicated region
      $region57: #{tpu_custom_call.1} parent=5 // pred_check
        %p529 = pneg %p528
      $region58: #{tpu_custom_call.1} parent=5 // pred_check_branch
        %531 = sbr.rel (%p529) target = $region60
      $region59: #{tpu_custom_call.1} parent=5 // pred_region
        %s532 = ssub.s32 %s24, 2
        // Predicated region
        $region61: #{tpu_custom_call.1} parent=59 // pred_check
          %p533 = pneg %p147
        $region62: #{tpu_custom_call.1} parent=59 // pred_check_branch
          %535 = sbr.rel (%p533) target = $region64
        $region63: #{tpu_custom_call.1} parent=59 // pred_region
          %s536 = sand.u32 %s132, 1
          %s537 = scalar_lea.sflag [#allocation4], %s536
          %s538 = sand.u32 %s132, 1
          %s539 = smul.addr %s538, 8
          %s540 = scalar_lea.vmem [#allocation8], %s539
          %541 = dma.done %s537, 128
        $region64: #{tpu_custom_call.1} parent=59 // pred_fallthru
          _
        // Predicated region
        $region65: #{tpu_custom_call.1} parent=59 // pred_check
          %p542 = pneg %p173
        $region66: #{tpu_custom_call.1} parent=59 // pred_check_branch
          %544 = sbr.rel (%p542) target = $region68
        $region67: #{tpu_custom_call.1} parent=59 // pred_region
          %s545 = sand.u32 %s158, 1
          %s546 = scalar_lea.sflag [#allocation10], %s545
          %s547 = sand.u32 %s158, 1
          %s548 = smul.addr %s547, 8
          %s549 = scalar_lea.vmem [#allocation9], %s548
          %550 = dma.done %s546, 128
        $region68: #{tpu_custom_call.1} parent=59 // pred_fallthru
          _
      $region60: #{tpu_custom_call.1} parent=5 // pred_fallthru
        _
    $region6: #{tpu_custom_call.1} parent=1 // loop_footer
      %s28 = sadd.s32 1, %s24
    $region7: #{tpu_custom_call.1} parent=1 // loop_footer_branch
      %23 = sbr.rel target = $region3
    $region8: #{tpu_custom_call.1} parent=1 // loop_exit
      _
    %551 = vsyncpa [#allocation3], 1
    %s552 = scalar_lea.sflag [#allocation3], 1
    %553 = vsyncpa %s552, 1
    %554 = vsyncpa [#allocation6], 1
    %s555 = scalar_lea.sflag [#allocation6], 1
    %556 = vsyncpa %s555, 1
    %557 = vsyncpa [#allocation4], 1
    %s558 = scalar_lea.sflag [#allocation4], 1
    %559 = vsyncpa %s558, 1
    %560 = vsyncpa [#allocation10], 1
    %s561 = scalar_lea.sflag [#allocation10], 1
    %562 = vsyncpa %s561, 1

</llo_original>
